<compile_context>
chip_gen: v6e
topology: v6e:2x2x1
jax: 0.10.0
libtpu: 0.0.40
codegen_flags: <defaults>
</compile_context>

<pallas_src>
import functools

import jax
import jax.numpy as jnp
from jax import lax
from jax.experimental import pallas as pl
from jax.experimental.pallas import tpu as pltpu

LAYER_NORM_EPS = 1e-12  # BERT default
_INV_SQRT2 = 0.7071067811865476


def _round_up(x, m):
    return (x + m - 1) // m * m


def _lm_head_kernel(x_ref, wd_ref, bd_ref, gamma_ref, beta_ref,
                    wdec_ref, bias_ref, out_ref, t_ref):
    """Grid: (M tiles, V tiles); vocab is the inner (sequential) axis.

    The dense+gelu+LayerNorm transform is computed once per M tile (at the
    first vocab step) and cached in the bf16 VMEM scratch `t_ref`.  Every grid
    step then does one (tm, H) x (H, tn) bf16 MXU matmul with f32 accumulation
    against a vocab tile of the decoder weight.
    """
    @pl.when(pl.program_id(1) == 0)
    def _():
        # dense: x @ Wd + bd  (bf16 operands on the MXU, f32 accumulation)
        h = jnp.dot(x_ref[...], wd_ref[...],
                    preferred_element_type=jnp.float32) + bd_ref[...]
        # exact gelu (erf form, matches HF ACT2FN["gelu"]) -- f32 VPU/EUP math
        h = 0.5 * h * (1.0 + lax.erf(h * jnp.float32(_INV_SQRT2)))
        # LayerNorm over the hidden axis (f32)
        mu = jnp.mean(h, axis=-1, keepdims=True)
        var = jnp.mean(jnp.square(h - mu), axis=-1, keepdims=True)
        h = (h - mu) * lax.rsqrt(var + LAYER_NORM_EPS)
        # cast only at the MXU operand boundary
        t_ref[...] = (h * gamma_ref[...] + beta_ref[...]).astype(t_ref.dtype)

    # decoder: t @ Wdec[:, tile] + bias[tile]   (bf16 x bf16 -> f32 acc)
    out_ref[...] = (jnp.dot(t_ref[...], wdec_ref[...],
                            preferred_element_type=jnp.float32)
                    + bias_ref[...]).astype(out_ref.dtype)


def bert_lm_prediction_head(hidden_states, params, *, tm=1024, tn=1024,
                            out_dtype=jnp.float32):
    """hidden_states: (B, S, H). Returns (B, S, V) logits in `out_dtype`.

    params (weights stored as (in, out), i.e. the transpose of nn.Linear.weight):
      dense_w (H, H), dense_b (H,), ln_gamma (H,), ln_beta (H,),
      decoder_w (H, V), decoder_b (V,)

    Tuning hints: v5e (MXU-bound) likes tm=2048; v6e/v7x (writeback-bound)
    benefit most from out_dtype=jnp.bfloat16 (semantic change vs. f32 PyTorch).
    """
    B, S, H = hidden_states.shape
    V = params["decoder_w"].shape[1]
    M = B * S
    assert H % 128 == 0, f"hidden_size must be a multiple of 128 (got {H})"

    # Clamp tiles to the (padded) problem size, keep (8, 128) alignment.
    tm = _round_up(min(tm, M), 8)
    tn = _round_up(min(tn, V), 128)
    Mp = _round_up(M, tm)    # padded rows   (B*S)
    Vp = _round_up(V, tn)    # padded vocab

    # --- operand prep (padding + dtype casts happen once, outside the grid) ---
    x2d = hidden_states.reshape(M, H)
    if Mp != M:
        x2d = jnp.pad(x2d, ((0, Mp - M), (0, 0)))
    x2d = x2d.astype(jnp.bfloat16)                              # bf16 MXU operand

    wd = params["dense_w"].astype(jnp.bfloat16)                 # (H, H) = W_dense^T
    bd = params["dense_b"].reshape(1, H).astype(jnp.float32)
    gamma = params["ln_gamma"].reshape(1, H).astype(jnp.float32)
    beta = params["ln_beta"].reshape(1, H).astype(jnp.float32)

    wdec = params["decoder_w"].astype(jnp.bfloat16)             # (H, V) = W_decoder^T
    bias = params["decoder_b"].reshape(1, V).astype(jnp.float32)
    if Vp != V:
        wdec = jnp.pad(wdec, ((0, 0), (0, Vp - V)))
        bias = jnp.pad(bias, ((0, 0), (0, Vp - V)))

    # --- VMEM budget: exact per-buffer byte counts + fixed margin for Mosaic
    # internal scratch; capped below the 64 MiB physical VMEM of v7x per TC.
    out_bytes = jnp.dtype(out_dtype).itemsize
    est = (2 * tm * H * 2          # x tile (bf16, double-buffered)
           + 2 * H * H * 2         # dense W (bf16; grid-invariant, 2 buffers)
           + 2 * 3 * H * 4         # dense b, gamma, beta (f32)
           + 2 * H * tn * 2        # decoder W tile (bf16)
           + 2 * tn * 4            # decoder bias tile (f32)
           + 2 * tm * tn * out_bytes  # out tile
           + tm * H * 2)           # t scratch (bf16)
    vmem_limit = min(est + (6 << 20), 56 << 20)

    out = pl.pallas_call(
        _lm_head_kernel,
        out_shape=jax.ShapeDtypeStruct((Mp, Vp), out_dtype),
        grid_spec=pltpu.PrefetchScalarGridSpec(
            num_scalar_prefetch=0,
            grid=(Mp // tm, Vp // tn),
            in_specs=[
                pl.BlockSpec((tm, H), lambda i, j: (i, 0)),    # x tile (bf16)
                pl.BlockSpec((H, H), lambda i, j: (0, 0)),     # dense W^T (bf16)
                pl.BlockSpec((1, H), lambda i, j: (0, 0)),     # dense b
                pl.BlockSpec((1, H), lambda i, j: (0, 0)),     # LN gamma
                pl.BlockSpec((1, H), lambda i, j: (0, 0)),     # LN beta
                pl.BlockSpec((H, tn), lambda i, j: (0, j)),    # decoder W^T tile (bf16)
                pl.BlockSpec((1, tn), lambda i, j: (0, j)),    # decoder bias tile
            ],
            out_specs=pl.BlockSpec((tm, tn), lambda i, j: (i, j)),
            scratch_shapes=[pltpu.VMEM((tm, H), jnp.bfloat16)],
        ),
        compiler_params=pltpu.CompilerParams(
            # M axis is independent across tiles -> parallel (megacore);
            # vocab axis must stay sequential for the t_ref caching pattern.
            dimension_semantics=("parallel", "arbitrary"),
            vmem_limit_bytes=vmem_limit,
        ),
    )(x2d, wd, bd, gamma, beta, wdec, bias)

    if Mp != M or Vp != V:
        out = out[:M, :V]
    return out.reshape(B, S, V)


def _reference(hidden_states, params):
    """Plain-JAX f32 reference of the PyTorch forward."""
    h = hidden_states @ params["dense_w"] + params["dense_b"]
    h = 0.5 * h * (1.0 + lax.erf(h / jnp.sqrt(2.0)))
    mu = jnp.mean(h, axis=-1, keepdims=True)
    var = jnp.mean(jnp.square(h - mu), axis=-1, keepdims=True)
    h = (h - mu) * lax.rsqrt(var + LAYER_NORM_EPS)
    h = h * params["ln_gamma"] + params["ln_beta"]
    return h @ params["decoder_w"] + params["decoder_b"]


if __name__ == "__main__":
    # Small, TPU-friendly synthetic config (stand-in for bert-base-chinese).
    # SEQ=15 (M=30) and VOCAB=1000 are deliberately NOT tile multiples so the
    # pad-and-slice path is exercised; tm=16, tn=256 gives a (2, 4) grid:
    # multiple M tiles (parallel axis) and multiple vocab tiles (sequential
    # axis with the cached-transform pattern).
    BATCH, SEQ, HIDDEN, VOCAB = 2, 15, 128, 1000

    key = jax.random.PRNGKey(0)
    k_x, k_wd, k_bd, k_wdec = jax.random.split(key, 4)

    hidden_states = jax.random.normal(k_x, (BATCH, SEQ, HIDDEN), jnp.float32)

    params = {
        # stored as (in, out), i.e. the transpose of nn.Linear.weight
        "dense_w": 0.02 * jax.random.normal(k_wd, (HIDDEN, HIDDEN), jnp.float32),
        "dense_b": 0.02 * jax.random.normal(k_bd, (HIDDEN,), jnp.float32),
        "ln_gamma": jnp.ones((HIDDEN,), jnp.float32),
        "ln_beta": jnp.zeros((HIDDEN,), jnp.float32),
        "decoder_w": 0.02 * jax.random.normal(k_wdec, (HIDDEN, VOCAB), jnp.float32),
        "decoder_b": jnp.zeros((VOCAB,), jnp.float32),  # self.bias init = zeros
    }

    # tm defaults to 1024 / tn to 1024 for real BERT shapes; shrink here so
    # the multi-tile + padding code paths are exercised at small test sizes.
    fn = jax.jit(functools.partial(bert_lm_prediction_head, tm=16, tn=256))
    out = fn(hidden_states, params)
    jax.block_until_ready(out)

    ref = _reference(hidden_states, params)
    assert out.shape == (BATCH, SEQ, VOCAB), out.shape
    # Both matmuls use bf16 operands (f32 accumulation) -> looser tolerance
    # than the pure-f32 path.
    assert jnp.allclose(out, ref, atol=2e-2, rtol=2e-2), float(
        jnp.max(jnp.abs(out - ref)))

    print("KERNEL_OK")
</pallas_src>

<mosaic_0001>
module attributes {stable_mosaic.version = 11 : i64} {
  func.func @_lm_head_kernel(%arg0: i32, %arg1: i32, %arg2: memref<16x128xbf16, #tpu.memory_space<vmem>>, %arg3: memref<128x128xbf16, #tpu.memory_space<vmem>>, %arg4: memref<1x128xf32, #tpu.memory_space<vmem>>, %arg5: memref<1x128xf32, #tpu.memory_space<vmem>>, %arg6: memref<1x128xf32, #tpu.memory_space<vmem>>, %arg7: memref<128x256xbf16, #tpu.memory_space<vmem>>, %arg8: memref<1x256xf32, #tpu.memory_space<vmem>>, %arg9: memref<16x256xf32, #tpu.memory_space<vmem>>, %arg10: memref<16x128xbf16, #tpu.memory_space<vmem>>) attributes {dimension_semantics = [#tpu.dimension_semantics<parallel>, #tpu.dimension_semantics<arbitrary>], iteration_bounds = array<i64: 2, 4>, scalar_prefetch = 0 : i64, scratch_operands = 1 : i64, tpu.core_type = #tpu.core_type<tc>, window_params = [{transform_indices = @transform_0, window_bounds = array<i64: 16, 128>}, {pipeline_mode = #tpu.pipeline_mode<synchronous>, transform_indices = @transform_1, window_bounds = array<i64: 128, 128>}, {pipeline_mode = #tpu.pipeline_mode<synchronous>, transform_indices = @transform_2, window_bounds = array<i64: 1, 128>}, {pipeline_mode = #tpu.pipeline_mode<synchronous>, transform_indices = @transform_3, window_bounds = array<i64: 1, 128>}, {pipeline_mode = #tpu.pipeline_mode<synchronous>, transform_indices = @transform_4, window_bounds = array<i64: 1, 128>}, {transform_indices = @transform_5, window_bounds = array<i64: 128, 256>}, {transform_indices = @transform_6, window_bounds = array<i64: 1, 256>}, {transform_indices = @transform_7, window_bounds = array<i64: 16, 256>}]} {
    %c0_i32 = arith.constant 0 : i32
    %0 = arith.cmpi eq, %arg1, %c0_i32 : i32
    %1 = arith.extui %0 : i1 to i32
    %c0_i32_0 = arith.constant 0 : i32
    %2 = arith.cmpi ne, %1, %c0_i32_0 : i32
    scf.if %2 {
      %c0_8 = arith.constant 0 : index
      %c0_9 = arith.constant 0 : index
      %10 = vector.load %arg2[%c0_8, %c0_9] : memref<16x128xbf16, #tpu.memory_space<vmem>>, vector<16x128xbf16>
      %c0_10 = arith.constant 0 : index
      %c0_11 = arith.constant 0 : index
      %11 = vector.load %arg3[%c0_10, %c0_11] : memref<128x128xbf16, #tpu.memory_space<vmem>>, vector<128x128xbf16>
      %cst_12 = arith.constant dense<0.000000e+00> : vector<16x128xf32>
      %12 = tpu.matmul %10, %11, %cst_12 {dimension_numbers = #tpu.dot_dimension_numbers<[1], [0], [0], [1], [0, 0, 1, 1], [], []>} : vector<16x128xbf16>, vector<128x128xbf16>, vector<16x128xf32> -> vector<16x128xf32>
      %c0_13 = arith.constant 0 : index
      %c0_14 = arith.constant 0 : index
      %13 = vector.load %arg4[%c0_13, %c0_14] : memref<1x128xf32, #tpu.memory_space<vmem>>, vector<1x128xf32>
      %14 = vector.broadcast %13 : vector<1x128xf32> to vector<16x128xf32>
      %15 = arith.addf %12, %14 : vector<16x128xf32>
      %cst_15 = arith.constant 5.000000e-01 : f32
      %16 = vector.broadcast %cst_15 : f32 to vector<16x128xf32>
      %17 = arith.mulf %16, %15 : vector<16x128xf32>
      %cst_16 = arith.constant 0.707106769 : f32
      %18 = vector.broadcast %cst_16 : f32 to vector<16x128xf32>
      %19 = arith.mulf %15, %18 : vector<16x128xf32>
      %20 = math.erf %19 : vector<16x128xf32>
      %cst_17 = arith.constant 1.000000e+00 : f32
      %21 = vector.broadcast %cst_17 : f32 to vector<16x128xf32>
      %22 = arith.addf %21, %20 : vector<16x128xf32>
      %23 = arith.mulf %17, %22 : vector<16x128xf32>
      %cst_18 = arith.constant dense<0.000000e+00> : vector<16xf32>
      %24 = vector.multi_reduction <add>, %23, %cst_18 [1] : vector<16x128xf32> to vector<16xf32>
      %25 = vector.shape_cast %24 : vector<16xf32> to vector<16x1xf32>
      %cst_19 = arith.constant 1.280000e+02 : f32
      %26 = vector.broadcast %cst_19 : f32 to vector<16x1xf32>
      %27 = arith.divf %25, %26 : vector<16x1xf32>
      %28 = vector.broadcast %27 : vector<16x1xf32> to vector<16x128xf32>
      %29 = arith.subf %23, %28 : vector<16x128xf32>
      %30 = arith.mulf %29, %29 : vector<16x128xf32>
      %cst_20 = arith.constant dense<0.000000e+00> : vector<16xf32>
      %31 = vector.multi_reduction <add>, %30, %cst_20 [1] : vector<16x128xf32> to vector<16xf32>
      %32 = vector.shape_cast %31 : vector<16xf32> to vector<16x1xf32>
      %cst_21 = arith.constant 1.280000e+02 : f32
      %33 = vector.broadcast %cst_21 : f32 to vector<16x1xf32>
      %34 = arith.divf %32, %33 : vector<16x1xf32>
      %35 = vector.broadcast %27 : vector<16x1xf32> to vector<16x128xf32>
      %36 = arith.subf %23, %35 : vector<16x128xf32>
      %cst_22 = arith.constant 9.99999996E-13 : f32
      %37 = vector.broadcast %cst_22 : f32 to vector<16x1xf32>
      %38 = arith.addf %34, %37 : vector<16x1xf32>
      %39 = math.rsqrt %38 : vector<16x1xf32>
      %40 = vector.broadcast %39 : vector<16x1xf32> to vector<16x128xf32>
      %41 = arith.mulf %36, %40 : vector<16x128xf32>
      %c0_23 = arith.constant 0 : index
      %c0_24 = arith.constant 0 : index
      %42 = vector.load %arg5[%c0_23, %c0_24] : memref<1x128xf32, #tpu.memory_space<vmem>>, vector<1x128xf32>
      %43 = vector.broadcast %42 : vector<1x128xf32> to vector<16x128xf32>
      %44 = arith.mulf %41, %43 : vector<16x128xf32>
      %c0_25 = arith.constant 0 : index
      %c0_26 = arith.constant 0 : index
      %45 = vector.load %arg6[%c0_25, %c0_26] : memref<1x128xf32, #tpu.memory_space<vmem>>, vector<1x128xf32>
      %46 = vector.broadcast %45 : vector<1x128xf32> to vector<16x128xf32>
      %47 = arith.addf %44, %46 : vector<16x128xf32>
      %48 = arith.truncf %47 : vector<16x128xf32> to vector<16x128xbf16>
      %c0_27 = arith.constant 0 : index
      %c0_28 = arith.constant 0 : index
      %49 = vector.load %arg10[%c0_27, %c0_28] : memref<16x128xbf16, #tpu.memory_space<vmem>>, vector<16x128xbf16>
      tpu.vector_store %arg10[%c0_27, %c0_28], %48 {strides = array<i32>} : memref<16x128xbf16, #tpu.memory_space<vmem>>, vector<16x128xbf16>,
    } else {
    }
    %c0 = arith.constant 0 : index
    %c0_1 = arith.constant 0 : index
    %3 = vector.load %arg10[%c0, %c0_1] : memref<16x128xbf16, #tpu.memory_space<vmem>>, vector<16x128xbf16>
    %c0_2 = arith.constant 0 : index
    %c0_3 = arith.constant 0 : index
    %4 = vector.load %arg7[%c0_2, %c0_3] : memref<128x256xbf16, #tpu.memory_space<vmem>>, vector<128x256xbf16>
    %cst = arith.constant dense<0.000000e+00> : vector<16x256xf32>
    %5 = tpu.matmul %3, %4, %cst {dimension_numbers = #tpu.dot_dimension_numbers<[1], [0], [0], [1], [0, 0, 1, 1], [], []>} : vector<16x128xbf16>, vector<128x256xbf16>, vector<16x256xf32> -> vector<16x256xf32>
    %c0_4 = arith.constant 0 : index
    %c0_5 = arith.constant 0 : index
    %6 = vector.load %arg8[%c0_4, %c0_5] : memref<1x256xf32, #tpu.memory_space<vmem>>, vector<1x256xf32>
    %7 = vector.broadcast %6 : vector<1x256xf32> to vector<16x256xf32>
    %8 = arith.addf %5, %7 : vector<16x256xf32>
    %c0_6 = arith.constant 0 : index
    %c0_7 = arith.constant 0 : index
    %9 = vector.load %arg9[%c0_6, %c0_7] : memref<16x256xf32, #tpu.memory_space<vmem>>, vector<16x256xf32>
    tpu.vector_store %arg9[%c0_6, %c0_7], %8 {strides = array<i32>} : memref<16x256xf32, #tpu.memory_space<vmem>>, vector<16x256xf32>,
    return
  }
  func.func @transform_0(%arg0: i32, %arg1: i32) -> (i32, i32) {
    %c0_i32 = arith.constant 0 : i32
    %c0_i32_0 = arith.constant 0 : i32
    return %arg0, %c0_i32 : i32, i32
  }
  func.func @transform_1(%arg0: i32, %arg1: i32) -> (i32, i32) {
    %c0_i32 = arith.constant 0 : i32
    %c0_i32_0 = arith.constant 0 : i32
    %c0_i32_1 = arith.constant 0 : i32
    return %c0_i32, %c0_i32_0 : i32, i32
  }
  func.func @transform_2(%arg0: i32, %arg1: i32) -> (i32, i32) {
    %c0_i32 = arith.constant 0 : i32
    %c0_i32_0 = arith.constant 0 : i32
    %c0_i32_1 = arith.constant 0 : i32
    return %c0_i32, %c0_i32_0 : i32, i32
  }
  func.func @transform_3(%arg0: i32, %arg1: i32) -> (i32, i32) {
    %c0_i32 = arith.constant 0 : i32
    %c0_i32_0 = arith.constant 0 : i32
    %c0_i32_1 = arith.constant 0 : i32
    return %c0_i32, %c0_i32_0 : i32, i32
  }
  func.func @transform_4(%arg0: i32, %arg1: i32) -> (i32, i32) {
    %c0_i32 = arith.constant 0 : i32
    %c0_i32_0 = arith.constant 0 : i32
    %c0_i32_1 = arith.constant 0 : i32
    return %c0_i32, %c0_i32_0 : i32, i32
  }
  func.func @transform_5(%arg0: i32, %arg1: i32) -> (i32, i32) {
    %c0_i32 = arith.constant 0 : i32
    %c0_i32_0 = arith.constant 0 : i32
    return %c0_i32, %arg1 : i32, i32
  }
  func.func @transform_6(%arg0: i32, %arg1: i32) -> (i32, i32) {
    %c0_i32 = arith.constant 0 : i32
    %c0_i32_0 = arith.constant 0 : i32
    return %c0_i32, %arg1 : i32, i32
  }
  func.func @transform_7(%arg0: i32, %arg1: i32) -> (i32, i32) {
    %c0_i32 = arith.constant 0 : i32
    return %arg0, %arg1 : i32, i32
  }
}

</mosaic_0001>

<llo_original>
// kernel: bert_lm_prediction_head.1
$region0: #{bert_lm_prediction_head.1}
  #allocation0 [shape = 'u32[]', space=smem, size = 0x4, offset = 0x4, fixed_abs, tag = 'smem constant byte address 0x4 - core index']
  #allocation1 [shape = 'u32[144,128]{1,0:T(1,128)}', space=vmem, size = 0x12000, scoped, tag = 'internal scratch']
  #allocation2 [shape = 'bf16[16,128]{1,0:T(8,128)(2,1)}', space=vmem, size = 0x1000, scoped, tag = 'scratch operand']
  %s0 = inlined_call_operand.vmem [shape: bf16[32,128], index: 0, kind: input, shape index: {}]
  %s1 = inlined_call_operand.vmem [shape: bf16[128,128], index: 1, kind: input, shape index: {}]
  %s2 = inlined_call_operand.vmem [shape: f32[1,128], index: 2, kind: input, shape index: {}]
  %s3 = inlined_call_operand.vmem [shape: f32[1,128], index: 3, kind: input, shape index: {}]
  %s4 = inlined_call_operand.vmem [shape: f32[1,128], index: 4, kind: input, shape index: {}]
  %s5 = inlined_call_operand.vmem [shape: bf16[128,1024], index: 5, kind: input, shape index: {}]
  %s6 = inlined_call_operand.vmem [shape: f32[1,1024], index: 6, kind: input, shape index: {}]
  %s7 = inlined_call_operand.vmem [shape: f32[32,1024], index: 7, kind: output, shape index: {}]
  %s8 = sld [smem:[#allocation0]]
  $region122: #{bert_lm_prediction_head.1} parent=0
    _
  %s10 = ssub.s32 1, %s8
  %s11 = scalar_select 0, %s10, %s8
  $region1: #{bert_lm_prediction_head.1} parent=0
    #allocation3 [shape = 'u8[131072]{0}', space=vmem, size = 0x20000, scoped, tag = 'input window, operand 5']
    #allocation4 [shape = 'u8[32768]{0}', space=vmem, size = 0x8000, scoped, tag = 'output window, operand 0']
    loop: start=0, step=1, limit=10
    $region2: #{bert_lm_prediction_head.1} parent=1 // loop_pre_header
      _
    $region3: #{bert_lm_prediction_head.1} parent=1 // loop_header
      %s13 = sphi 0, %s17
      %p14 = scmp.ge.s32.totalorder %s13, 10
      %s20 = sphi 0, %s32
      %s21 = sphi 0, %s28
      %s22 = sphi 0, %s20
      %s23 = sphi 0, %s21
      %s24 = sphi 0, %s22
      %s25 = sphi 0, %s23
      %s35 = sphi 0, %s37
      %s38 = sphi 0, %s35
      %s39 = sphi 0, %s38
      %s55 = sphi 0, %s39
      %s59 = sphi 0, %s59
      %s61 = sphi 0, %s59
      %s62 = sphi 0, %s61
      %s76 = sphi 0, %s62
      %s80 = sphi 0, %s80
      %s82 = sphi 0, %s80
      %s83 = sphi 0, %s82
      %s97 = sphi 0, %s83
      %s101 = sphi 0, %s101
      %s103 = sphi 0, %s101
      %s104 = sphi 0, %s103
      %s118 = sphi 0, %s104
      %s122 = sphi 0, %s122
      %s124 = sphi 0, %s122
      %s125 = sphi 0, %s124
      %s139 = sphi 0, %s125
      %s145 = sphi 0, %s147
      %s148 = sphi 0, %s145
      %s149 = sphi 0, %s148
      %s165 = sphi 0, %s149
      %s171 = sphi 0, %s173
      %s174 = sphi 0, %s171
      %s175 = sphi 0, %s174
      %s191 = sphi 0, %s175
      %s199 = sphi 0, %s201
      %s202 = sphi 0, %s199
      %s203 = sphi 0, %s202
      %s219 = sphi 0, %s203
    $region4: #{bert_lm_prediction_head.1} parent=1 // loop_header_branch
      %16 = sbr.rel (%p14) target = $region8
    $region5: #{bert_lm_prediction_head.1} parent=1 // loop_body
      %s18 = ssub.s32 %s13, 1
      %s19 = ssub.s32 %s13, 2
      %s26 = sadd.s32 1, %s21
      %p27 = scmp.ge.s32.totalorder %s26, 4
      %s28 = scalar_select %p27, 0, %s26
      %s29 = sadd.s32 1, %s20
      %s30 = scalar_select %p27, %s29, %s20
      %p31 = scmp.ge.s32.totalorder %s30, 2
      %s32 = scalar_select %p31, 0, %s30
      %s33 = ssub.s32 %s20, %s32
      %p34 = scmp.eq.s32.totalorder %s33, 0
      %s36 = sadd.s32 %s35, 1
      %s37 = scalar_select %p34, %s35, %s36
      %p40 = pneg %p34
      %p41 = scmp.eq.s32.totalorder %s13, 7
      %p42 = por %p40, %p41
      %p43 = scmp.ne.s32.totalorder %s35, %s38
      %p44 = scmp.eq.s32.totalorder %s13, 0
      %p45 = por %p43, %p44
      %p46 = scmp.ne.s32.totalorder %s35, %s38
      %p47 = scmp.eq.s32.totalorder %s18, 7
      %p48 = por %p46, %p47
      %p49 = scmp.ne.s32.totalorder %s38, %s39
      %p50 = scmp.eq.s32.totalorder %s18, 0
      %p51 = por %p49, %p50
      %p52 = scmp.ne.s32.totalorder %s38, %s39
      %p53 = scmp.eq.s32.totalorder %s19, 7
      %p54 = por %p52, %p53
      %p56 = scmp.ne.s32.totalorder %s39, %s55
      %p57 = scmp.eq.s32.totalorder %s19, 0
      %p58 = por %p56, %p57
      %s60 = sadd.s32 %s59, 1
      %p63 = scmp.eq.s32.totalorder %s13, 7
      %p64 = scmp.ne.s32.totalorder %s59, %s61
      %p65 = scmp.eq.s32.totalorder %s13, 0
      %p66 = por %p64, %p65
      %p67 = scmp.ne.s32.totalorder %s59, %s61
      %p68 = scmp.eq.s32.totalorder %s18, 7
      %p69 = por %p67, %p68
      %p70 = scmp.ne.s32.totalorder %s61, %s62
      %p71 = scmp.eq.s32.totalorder %s18, 0
      %p72 = por %p70, %p71
      %p73 = scmp.ne.s32.totalorder %s61, %s62
      %p74 = scmp.eq.s32.totalorder %s19, 7
      %p75 = por %p73, %p74
      %p77 = scmp.ne.s32.totalorder %s62, %s76
      %p78 = scmp.eq.s32.totalorder %s19, 0
      %p79 = por %p77, %p78
      %s81 = sadd.s32 %s80, 1
      %p84 = scmp.eq.s32.totalorder %s13, 7
      %p85 = scmp.ne.s32.totalorder %s80, %s82
      %p86 = scmp.eq.s32.totalorder %s13, 0
      %p87 = por %p85, %p86
      %p88 = scmp.ne.s32.totalorder %s80, %s82
      %p89 = scmp.eq.s32.totalorder %s18, 7
      %p90 = por %p88, %p89
      %p91 = scmp.ne.s32.totalorder %s82, %s83
      %p92 = scmp.eq.s32.totalorder %s18, 0
      %p93 = por %p91, %p92
      %p94 = scmp.ne.s32.totalorder %s82, %s83
      %p95 = scmp.eq.s32.totalorder %s19, 7
      %p96 = por %p94, %p95
      %p98 = scmp.ne.s32.totalorder %s83, %s97
      %p99 = scmp.eq.s32.totalorder %s19, 0
      %p100 = por %p98, %p99
      %s102 = sadd.s32 %s101, 1
      %p105 = scmp.eq.s32.totalorder %s13, 7
      %p106 = scmp.ne.s32.totalorder %s101, %s103
      %p107 = scmp.eq.s32.totalorder %s13, 0
      %p108 = por %p106, %p107
      %p109 = scmp.ne.s32.totalorder %s101, %s103
      %p110 = scmp.eq.s32.totalorder %s18, 7
      %p111 = por %p109, %p110
      %p112 = scmp.ne.s32.totalorder %s103, %s104
      %p113 = scmp.eq.s32.totalorder %s18, 0
      %p114 = por %p112, %p113
      %p115 = scmp.ne.s32.totalorder %s103, %s104
      %p116 = scmp.eq.s32.totalorder %s19, 7
      %p117 = por %p115, %p116
      %p119 = scmp.ne.s32.totalorder %s104, %s118
      %p120 = scmp.eq.s32.totalorder %s19, 0
      %p121 = por %p119, %p120
      %s123 = sadd.s32 %s122, 1
      %p126 = scmp.eq.s32.totalorder %s13, 7
      %p127 = scmp.ne.s32.totalorder %s122, %s124
      %p128 = scmp.eq.s32.totalorder %s13, 0
      %p129 = por %p127, %p128
      %p130 = scmp.ne.s32.totalorder %s122, %s124
      %p131 = scmp.eq.s32.totalorder %s18, 7
      %p132 = por %p130, %p131
      %p133 = scmp.ne.s32.totalorder %s124, %s125
      %p134 = scmp.eq.s32.totalorder %s18, 0
      %p135 = por %p133, %p134
      %p136 = scmp.ne.s32.totalorder %s124, %s125
      %p137 = scmp.eq.s32.totalorder %s19, 7
      %p138 = por %p136, %p137
      %p140 = scmp.ne.s32.totalorder %s125, %s139
      %p141 = scmp.eq.s32.totalorder %s19, 0
      %p142 = por %p140, %p141
      %s143 = ssub.s32 %s21, %s28
      %p144 = scmp.eq.s32.totalorder %s143, 0
      %s146 = sadd.s32 %s145, 1
      %s147 = scalar_select %p144, %s145, %s146
      %p150 = pneg %p144
      %p151 = scmp.eq.s32.totalorder %s13, 7
      %p152 = por %p150, %p151
      %p153 = scmp.ne.s32.totalorder %s145, %s148
      %p154 = scmp.eq.s32.totalorder %s13, 0
      %p155 = por %p153, %p154
      %p156 = scmp.ne.s32.totalorder %s145, %s148
      %p157 = scmp.eq.s32.totalorder %s18, 7
      %p158 = por %p156, %p157
      %p159 = scmp.ne.s32.totalorder %s148, %s149
      %p160 = scmp.eq.s32.totalorder %s18, 0
      %p161 = por %p159, %p160
      %p162 = scmp.ne.s32.totalorder %s148, %s149
      %p163 = scmp.eq.s32.totalorder %s19, 7
      %p164 = por %p162, %p163
      %p166 = scmp.ne.s32.totalorder %s149, %s165
      %p167 = scmp.eq.s32.totalorder %s19, 0
      %p168 = por %p166, %p167
      %s169 = ssub.s32 %s21, %s28
      %p170 = scmp.eq.s32.totalorder %s169, 0
      %s172 = sadd.s32 %s171, 1
      %s173 = scalar_select %p170, %s171, %s172
      %p176 = pneg %p170
      %p177 = scmp.eq.s32.totalorder %s13, 7
      %p178 = por %p176, %p177
      %p179 = scmp.ne.s32.totalorder %s171, %s174
      %p180 = scmp.eq.s32.totalorder %s13, 0
      %p181 = por %p179, %p180
      %p182 = scmp.ne.s32.totalorder %s171, %s174
      %p183 = scmp.eq.s32.totalorder %s18, 7
      %p184 = por %p182, %p183
      %p185 = scmp.ne.s32.totalorder %s174, %s175
      %p186 = scmp.eq.s32.totalorder %s18, 0
      %p187 = por %p185, %p186
      %p188 = scmp.ne.s32.totalorder %s174, %s175
      %p189 = scmp.eq.s32.totalorder %s19, 7
      %p190 = por %p188, %p189
      %p192 = scmp.ne.s32.totalorder %s175, %s191
      %p193 = scmp.eq.s32.totalorder %s19, 0
      %p194 = por %p192, %p193
      %s195 = ssub.s32 %s20, %s32
      %s196 = ssub.s32 %s21, %s28
      %s197 = sor.u32 %s195, %s196
      %p198 = scmp.eq.s32.totalorder %s197, 0
      %s200 = sadd.s32 %s199, 1
      %s201 = scalar_select %p198, %s199, %s200
      %p204 = pneg %p198
      %p205 = scmp.eq.s32.totalorder %s13, 7
      %p206 = por %p204, %p205
      %p207 = scmp.ne.s32.totalorder %s199, %s202
      %p208 = scmp.eq.s32.totalorder %s13, 0
      %p209 = por %p207, %p208
      %p210 = scmp.ne.s32.totalorder %s199, %s202
      %p211 = scmp.eq.s32.totalorder %s18, 7
      %p212 = por %p210, %p211
      %p213 = scmp.ne.s32.totalorder %s202, %s203
      %p214 = scmp.eq.s32.totalorder %s18, 0
      %p215 = por %p213, %p214
      %p216 = scmp.ne.s32.totalorder %s202, %s203
      %p217 = scmp.eq.s32.totalorder %s19, 7
      %p218 = por %p216, %p217
      %p220 = scmp.ne.s32.totalorder %s203, %s219
      %p221 = scmp.eq.s32.totalorder %s19, 0
      %p222 = por %p220, %p221
      %p223 = scmp.le.s32.totalorder 1, %s13
      %p224 = scmp.lt.s32.totalorder %s13, 9
      %p225 = pnand %p223, %p224
      %p226 = pneg %p225
      // Predicated region
      $region9: #{bert_lm_prediction_head.1} parent=5 // pred_check
        _
      $region10: #{bert_lm_prediction_head.1} parent=5 // pred_check_branch
        %228 = sbr.rel (%p225) target = $region12
      $region11: #{bert_lm_prediction_head.1} parent=5 // pred_region
        %s229 = ssub.s32 %s13, 1
        // Predicated region
        $region13: #{bert_lm_prediction_head.1} parent=11 // pred_check
          %p230 = pneg %p72
        $region14: #{bert_lm_prediction_head.1} parent=11 // pred_check_branch
          %232 = sbr.rel (%p230) target = $region16
        $region15: #{bert_lm_prediction_head.1} parent=11 // pred_region
          _
        $region16: #{bert_lm_prediction_head.1} parent=11 // pred_fallthru
          _
        // Predicated region
        $region17: #{bert_lm_prediction_head.1} parent=11 // pred_check
          %p233 = pneg %p93
        $region18: #{bert_lm_prediction_head.1} parent=11 // pred_check_branch
          %235 = sbr.rel (%p233) target = $region20
        $region19: #{bert_lm_prediction_head.1} parent=11 // pred_region
          _
        $region20: #{bert_lm_prediction_head.1} parent=11 // pred_fallthru
          _
        // Predicated region
        $region21: #{bert_lm_prediction_head.1} parent=11 // pred_check
          %p236 = pneg %p114
        $region22: #{bert_lm_prediction_head.1} parent=11 // pred_check_branch
          %238 = sbr.rel (%p236) target = $region24
        $region23: #{bert_lm_prediction_head.1} parent=11 // pred_region
          _
        $region24: #{bert_lm_prediction_head.1} parent=11 // pred_fallthru
          _
        // Predicated region
        $region25: #{bert_lm_prediction_head.1} parent=11 // pred_check
          %p239 = pneg %p135
        $region26: #{bert_lm_prediction_head.1} parent=11 // pred_check_branch
          %241 = sbr.rel (%p239) target = $region28
        $region27: #{bert_lm_prediction_head.1} parent=11 // pred_region
          _
        $region28: #{bert_lm_prediction_head.1} parent=11 // pred_fallthru
          _
      $region12: #{bert_lm_prediction_head.1} parent=5 // pred_fallthru
        _
      %p242 = scmp.lt.s32.totalorder %s13, 8
      // Predicated region
      $region29: #{bert_lm_prediction_head.1} parent=5 // pred_check
        %p243 = pneg %p242
      $region30: #{bert_lm_prediction_head.1} parent=5 // pred_check_branch
        %245 = sbr.rel (%p243) target = $region32
      $region31: #{bert_lm_prediction_head.1} parent=5 // pred_region
        // Predicated region
        $region33: #{bert_lm_prediction_head.1} parent=31 // pred_check
          %p246 = pneg %p45
        $region34: #{bert_lm_prediction_head.1} parent=31 // pred_check_branch
          %248 = sbr.rel (%p246) target = $region36
        $region35: #{bert_lm_prediction_head.1} parent=31 // pred_region
          %s249 = smul.u32 2, %s20
          %p250 = scmp.lt.s32.totalorder %s249, 3
          %s251 = scalar_select %p250, %s249, 3
          %s252 = smul.addr %s251, 4
          %s253 = scalar_lea.vmem %s0, %s252
          %s254 = smul.u32 2, %s20
        $region36: #{bert_lm_prediction_head.1} parent=31 // pred_fallthru
          _
        // Predicated region
        $region37: #{bert_lm_prediction_head.1} parent=31 // pred_check
          %p255 = pneg %p155
        $region38: #{bert_lm_prediction_head.1} parent=31 // pred_check_branch
          %257 = sbr.rel (%p255) target = $region40
        $region39: #{bert_lm_prediction_head.1} parent=31 // pred_region
          %s258 = sand.u32 %s145, 1
          %s259 = sand.u32 %s145, 1
          %s260 = smul.addr %s259, 128
          %s261 = scalar_lea.vmem [#allocation3], %s260
          %s262 = smul.u32 2, %s21
          %s263 = smul.addr %s262, 4
          %s264 = scalar_lea.vmem %s5, %s263
          // Predicated region
          $region41: #{bert_lm_prediction_head.1} parent=39 // pred_check
            _
          $region42: #{bert_lm_prediction_head.1} parent=39 // pred_check_branch
            %266 = sbr.rel (0) target = $region44
          $region43: #{bert_lm_prediction_head.1} parent=39 // pred_region
            // Predicated region
            $region45: #{bert_lm_prediction_head.1} parent=43 // pred_check
              _
            $region46: #{bert_lm_prediction_head.1} parent=43 // pred_check_branch
              %268 = sbr.rel (0) target = $region48
            $region47: #{bert_lm_prediction_head.1} parent=43 // pred_region
              // Predicated region
              $region60: #{bert_lm_prediction_head.1} parent=47 // pred_check
                _
              $region61: #{bert_lm_prediction_head.1} parent=47 // pred_check_branch
                %314 = sbr.rel (0) target = $region63
              $region62: #{bert_lm_prediction_head.1} parent=47 // pred_region
                loop: start=0, step=1, limit=1
                $region64: #{bert_lm_prediction_head.1} parent=62 // loop_pre_header
                  _
                $region65: #{bert_lm_prediction_head.1} parent=62 // loop_header
                  %s316 = sphi 0, %s320
                  %p317 = scmp.ge.s32.totalorder %s316, 1
                  %s321 = sphi %s264, %s264
                  %s322 = sphi %s261, %s261
                $region66: #{bert_lm_prediction_head.1} parent=62 // loop_header_branch
                  %319 = sbr.rel (%p317) target = $region70
                $region67: #{bert_lm_prediction_head.1} parent=62 // loop_body
                  %v323 = vld [vmem:[%s321] sm:$0xff]
                  %324 = vst [vmem:[%s322] sm:$0xff] %v323
                  %v325 = vld [vmem:[%s321 + $0x20] sm:$0xff]
                  %326 = vst [vmem:[%s322 + $0x8] sm:$0xff] %v325
                  %v327 = vld [vmem:[%s321 + $0x40] sm:$0xff]
                  %328 = vst [vmem:[%s322 + $0x10] sm:$0xff] %v327
                  %v329 = vld [vmem:[%s321 + $0x60] sm:$0xff]
                  %330 = vst [vmem:[%s322 + $0x18] sm:$0xff] %v329
                  %v331 = vld [vmem:[%s321 + $0x80] sm:$0xff]
                  %332 = vst [vmem:[%s322 + $0x20] sm:$0xff] %v331
                  %v333 = vld [vmem:[%s321 + $0xa0] sm:$0xff]
                  %334 = vst [vmem:[%s322 + $0x28] sm:$0xff] %v333
                  %v335 = vld [vmem:[%s321 + $0xc0] sm:$0xff]
                  %336 = vst [vmem:[%s322 + $0x30] sm:$0xff] %v335
                  %v337 = vld [vmem:[%s321 + $0xe0] sm:$0xff]
                  %338 = vst [vmem:[%s322 + $0x38] sm:$0xff] %v337
                  %v339 = vld [vmem:[%s321 + $0x100] sm:$0xff]
                  %340 = vst [vmem:[%s322 + $0x40] sm:$0xff] %v339
                  %v341 = vld [vmem:[%s321 + $0x120] sm:$0xff]
                  %342 = vst [vmem:[%s322 + $0x48] sm:$0xff] %v341
                  %v343 = vld [vmem:[%s321 + $0x140] sm:$0xff]
                  %344 = vst [vmem:[%s322 + $0x50] sm:$0xff] %v343
                  %v345 = vld [vmem:[%s321 + $0x160] sm:$0xff]
                  %346 = vst [vmem:[%s322 + $0x58] sm:$0xff] %v345
                  %v347 = vld [vmem:[%s321 + $0x180] sm:$0xff]
                  %348 = vst [vmem:[%s322 + $0x60] sm:$0xff] %v347
                  %v349 = vld [vmem:[%s321 + $0x1a0] sm:$0xff]
                  %350 = vst [vmem:[%s322 + $0x68] sm:$0xff] %v349
                  %v351 = vld [vmem:[%s321 + $0x1c0] sm:$0xff]
                  %352 = vst [vmem:[%s322 + $0x70] sm:$0xff] %v351
                  %v353 = vld [vmem:[%s321 + $0x1e0] sm:$0xff]
                  %354 = vst [vmem:[%s322 + $0x78] sm:$0xff] %v353
                $region68: #{bert_lm_prediction_head.1} parent=62 // loop_footer
                  %s320 = sadd.s32 1, %s316
                $region69: #{bert_lm_prediction_head.1} parent=62 // loop_footer_branch
                  %315 = sbr.rel target = $region65
                $region70: #{bert_lm_prediction_head.1} parent=62 // loop_exit
                  _
              $region63: #{bert_lm_prediction_head.1} parent=47 // pred_fallthru
                _
              // Predicated region
              $region71: #{bert_lm_prediction_head.1} parent=47 // pred_check
                _
              $region72: #{bert_lm_prediction_head.1} parent=47 // pred_check_branch
                %356 = sbr.rel target = $region74
              $region73: #{bert_lm_prediction_head.1} parent=47 // pred_region
                _
              $region74: #{bert_lm_prediction_head.1} parent=47 // pred_fallthru
                _
            $region48: #{bert_lm_prediction_head.1} parent=43 // pred_fallthru
              _
            // Predicated region
            $region49: #{bert_lm_prediction_head.1} parent=43 // pred_check
              _
            $region50: #{bert_lm_prediction_head.1} parent=43 // pred_check_branch
              %270 = sbr.rel target = $region52
            $region51: #{bert_lm_prediction_head.1} parent=43 // pred_region
              %s272 = ssub.s32 256, 1
              loop: start=0, step=1, limit=1
              $region53: #{bert_lm_prediction_head.1} parent=51 // loop_pre_header
                _
              $region54: #{bert_lm_prediction_head.1} parent=51 // loop_header
                %s274 = sphi 0, %s278
                %p275 = scmp.ge.s32.totalorder %s274, 1
                %s279 = sphi %s264, %s264
                %s280 = sphi %s261, %s261
              $region55: #{bert_lm_prediction_head.1} parent=51 // loop_header_branch
                %277 = sbr.rel (%p275) target = $region59
              $region56: #{bert_lm_prediction_head.1} parent=51 // loop_body
                %v281 = vld [vmem:[%s279] sm:%s272]
                %282 = vst [vmem:[%s280] sm:%s272] %v281
                %v283 = vld [vmem:[%s279 + $0x20] sm:%s272]
                %284 = vst [vmem:[%s280 + $0x8] sm:%s272] %v283
                %v285 = vld [vmem:[%s279 + $0x40] sm:%s272]
                %286 = vst [vmem:[%s280 + $0x10] sm:%s272] %v285
                %v287 = vld [vmem:[%s279 + $0x60] sm:%s272]
                %288 = vst [vmem:[%s280 + $0x18] sm:%s272] %v287
                %v289 = vld [vmem:[%s279 + $0x80] sm:%s272]
                %290 = vst [vmem:[%s280 + $0x20] sm:%s272] %v289
                %v291 = vld [vmem:[%s279 + $0xa0] sm:%s272]
                %292 = vst [vmem:[%s280 + $0x28] sm:%s272] %v291
                %v293 = vld [vmem:[%s279 + $0xc0] sm:%s272]
                %294 = vst [vmem:[%s280 + $0x30] sm:%s272] %v293
                %v295 = vld [vmem:[%s279 + $0xe0] sm:%s272]
                %296 = vst [vmem:[%s280 + $0x38] sm:%s272] %v295
                %v297 = vld [vmem:[%s279 + $0x100] sm:%s272]
                %298 = vst [vmem:[%s280 + $0x40] sm:%s272] %v297
                %v299 = vld [vmem:[%s279 + $0x120] sm:%s272]
                %300 = vst [vmem:[%s280 + $0x48] sm:%s272] %v299
                %v301 = vld [vmem:[%s279 + $0x140] sm:%s272]
                %302 = vst [vmem:[%s280 + $0x50] sm:%s272] %v301
                %v303 = vld [vmem:[%s279 + $0x160] sm:%s272]
                %304 = vst [vmem:[%s280 + $0x58] sm:%s272] %v303
                %v305 = vld [vmem:[%s279 + $0x180] sm:%s272]
                %306 = vst [vmem:[%s280 + $0x60] sm:%s272] %v305
                %v307 = vld [vmem:[%s279 + $0x1a0] sm:%s272]
                %308 = vst [vmem:[%s280 + $0x68] sm:%s272] %v307
                %v309 = vld [vmem:[%s279 + $0x1c0] sm:%s272]
                %310 = vst [vmem:[%s280 + $0x70] sm:%s272] %v309
                %v311 = vld [vmem:[%s279 + $0x1e0] sm:%s272]
                %312 = vst [vmem:[%s280 + $0x78] sm:%s272] %v311
              $region57: #{bert_lm_prediction_head.1} parent=51 // loop_footer
                %s278 = sadd.s32 1, %s274
              $region58: #{bert_lm_prediction_head.1} parent=51 // loop_footer_branch
                %273 = sbr.rel target = $region54
              $region59: #{bert_lm_prediction_head.1} parent=51 // loop_exit
                _
            $region52: #{bert_lm_prediction_head.1} parent=43 // pred_fallthru
              _
          $region44: #{bert_lm_prediction_head.1} parent=39 // pred_fallthru
            _
          %357 = vnop
        $region40: #{bert_lm_prediction_head.1} parent=31 // pred_fallthru
          _
        // Predicated region
        $region75: #{bert_lm_prediction_head.1} parent=31 // pred_check
          %p358 = pneg %p181
        $region76: #{bert_lm_prediction_head.1} parent=31 // pred_check_branch
          %360 = sbr.rel (%p358) target = $region78
        $region77: #{bert_lm_prediction_head.1} parent=31 // pred_region
          %s361 = smul.u32 2, %s21
          %p362 = scmp.lt.s32.totalorder %s361, 7
          %s363 = scalar_select %p362, %s361, 7
          %s364 = scalar_lea.vmem %s6, %s363
          %s365 = smul.u32 2, %s21
        $region78: #{bert_lm_prediction_head.1} parent=31 // pred_fallthru
          _
      $region32: #{bert_lm_prediction_head.1} parent=5 // pred_fallthru
        _
      %p366 = scmp.le.s32.totalorder 1, %s13
      %p367 = scmp.lt.s32.totalorder %s13, 9
      %p368 = pnand %p366, %p367
      %p369 = pneg %p368
      // Predicated region
      $region79: #{bert_lm_prediction_head.1} parent=5 // pred_check
        _
      $region80: #{bert_lm_prediction_head.1} parent=5 // pred_check_branch
        %371 = sbr.rel (%p368) target = $region82
      $region81: #{bert_lm_prediction_head.1} parent=5 // pred_region
        %s372 = ssub.s32 %s13, 1
        %s373 = sand.u32 %s148, 1
        %s374 = sand.u32 %s148, 1
        %s375 = smul.addr %s374, 128
        %s376 = scalar_lea.vmem [#allocation3], %s375
        // Predicated region
        $region83: #{bert_lm_prediction_head.1} parent=81 // pred_check
          %p377 = pneg %p161
        $region84: #{bert_lm_prediction_head.1} parent=81 // pred_check_branch
          %379 = sbr.rel (%p377) target = $region86
        $region85: #{bert_lm_prediction_head.1} parent=81 // pred_region
          _
        $region86: #{bert_lm_prediction_head.1} parent=81 // pred_fallthru
          _
        %s380 = smul.u32 2, %s22
        %p381 = scmp.lt.s32.totalorder %s380, 3
        %s382 = scalar_select %p381, %s380, 3
        %s383 = smul.addr %s382, 4
        %s384 = scalar_lea.vmem %s0, %s383
        %p385 = pneg %p51
        %p386 = pneg %p48
        %p387 = pneg %p72
        %p388 = pneg %p69
        %p389 = pneg %p93
        %p390 = pneg %p90
        %p391 = pneg %p114
        %p392 = pneg %p111
        %p393 = pneg %p135
        %p394 = pneg %p132
        %s395 = sand.u32 %s148, 1
        %s396 = sand.u32 %s148, 1
        %s397 = smul.addr %s396, 128
        %s398 = scalar_lea.vmem [#allocation3], %s397
        %p399 = pneg %p161
        %p400 = pneg %p158
        %s401 = smul.u32 2, %s23
        %p402 = scmp.lt.s32.totalorder %s401, 7
        %s403 = scalar_select %p402, %s401, 7
        %s404 = scalar_lea.vmem %s6, %s403
        %p405 = pneg %p187
        %p406 = pneg %p184
        %p407 = pneg %p215
        %p408 = pneg %p212
        %s409 = sand.u32 %s202, 1
        %s410 = sand.u32 %s202, 1
        %s411 = smul.addr %s410, 32
        %s412 = scalar_lea.vmem [#allocation4], %s411
        %s413 = smul.u32 2, %s22
        %p414 = scmp.lt.s32.totalorder %s413, 3
        %s415 = scalar_select %p414, %s413, 3
        %s416 = smul.addr %s415, 4
        %s417 = scalar_lea.vmem %s0, %s416
        %s418 = smul.u32 2, %s22
        %s419 = smul.u32 2, %s23
        %s420 = smul.u32 2, %s23
        %p421 = scmp.lt.s32.totalorder %s420, 7
        %s422 = scalar_select %p421, %s420, 7
        %s423 = scalar_lea.vmem %s6, %s422
        %s424 = smul.u32 2, %s23
        %s425 = smul.u32 2, %s22
        %s426 = smul.u32 2, %s23
        %p428 = scmp.eq.s32.totalorder %s23, 0
        // Predicated region
        $region87: #{bert_lm_prediction_head.1} parent=81 // pred_check
          %p429 = pneg %p428
        $region88: #{bert_lm_prediction_head.1} parent=81 // pred_check_branch
          %431 = sbr.rel (%p429) target = $region90
        $region89: #{bert_lm_prediction_head.1} parent=81 // pred_region
          %v432 = vld [vmem:[%s417] sm:$0xf]
          %v433 = vld [vmem:[%s417 + $0x4] sm:$0xf]
          %v434 = vld [vmem:[%s1] sm:$0xf]
          %v435 = vld [vmem:[%s1 + $0x4] sm:$0xf]
          %v436 = vld [vmem:[%s1 + $0x8] sm:$0xf]
          %v437 = vld [vmem:[%s1 + $0xc] sm:$0xf]
          %v438 = vld [vmem:[%s1 + $0x10] sm:$0xf]
          %v439 = vld [vmem:[%s1 + $0x14] sm:$0xf]
          %v440 = vld [vmem:[%s1 + $0x18] sm:$0xf]
          %v441 = vld [vmem:[%s1 + $0x1c] sm:$0xf]
          %v442 = vld [vmem:[%s1 + $0x20] sm:$0xf]
          %v443 = vld [vmem:[%s1 + $0x24] sm:$0xf]
          %v444 = vld [vmem:[%s1 + $0x28] sm:$0xf]
          %v445 = vld [vmem:[%s1 + $0x2c] sm:$0xf]
          %v446 = vld [vmem:[%s1 + $0x30] sm:$0xf]
          %v447 = vld [vmem:[%s1 + $0x34] sm:$0xf]
          %v448 = vld [vmem:[%s1 + $0x38] sm:$0xf]
          %v449 = vld [vmem:[%s1 + $0x3c] sm:$0xf]
          %v450 = vld [vmem:[%s2] sm:$0x1]
          %v452 = vlaneseq
          %v453 = vshrl.u32 %v452, 7
          %v454 = vsub.s32 0, %v453
          %v455 = vrot.slane %v450, %v454
          %v459 = vunpack.c.l.b16 %v432
          %v460 = vunpack.c.l.b16 %v433
          %v461 = vpack.c.b16 %v460, %v459
          %v479 = vunpack.c.l.b16 %v434
          %v480 = vunpack.c.l.b16 %v435
          %v481 = vunpack.c.l.b16 %v436
          %v482 = vunpack.c.l.b16 %v437
          %v483 = vunpack.c.l.b16 %v438
          %v484 = vunpack.c.l.b16 %v439
          %v485 = vunpack.c.l.b16 %v440
          %v486 = vunpack.c.l.b16 %v441
          %v487 = vunpack.c.l.b16 %v442
          %v488 = vunpack.c.l.b16 %v443
          %v489 = vunpack.c.l.b16 %v444
          %v490 = vunpack.c.l.b16 %v445
          %v491 = vunpack.c.l.b16 %v446
          %v492 = vunpack.c.l.b16 %v447
          %v493 = vunpack.c.l.b16 %v448
          %v494 = vunpack.c.l.b16 %v449
          %v495 = vpack.c.b16 %v480, %v479
          %v496 = vpack.c.b16 %v482, %v481
          %v497 = vpack.c.b16 %v484, %v483
          %v498 = vpack.c.b16 %v486, %v485
          %v499 = vpack.c.b16 %v488, %v487
          %v500 = vpack.c.b16 %v490, %v489
          %v501 = vpack.c.b16 %v492, %v491
          %v502 = vpack.c.b16 %v494, %v493
          %511 = vmatprep.subr.bf16.mxu0 0
          %512 = vmatpush1.bf16.msra.mxu0 %v502
          %513 = vmatprep.subr.bf16.mxu0 0
          %514 = vmatpush1.bf16.msra.mxu0 %v501
          %515 = vmatprep.subr.bf16.mxu0 0
          %516 = vmatpush1.bf16.msra.mxu0 %v500
          %517 = vmatprep.subr.bf16.mxu0 0
          %518 = vmatpush1.bf16.msra.mxu0 %v499
          %519 = vmatprep.subr.bf16.mxu0 0
          %520 = vmatpush1.bf16.msra.mxu0 %v498
          %521 = vmatprep.subr.bf16.mxu0 0
          %522 = vmatpush1.bf16.msra.mxu0 %v497
          %523 = vmatprep.subr.bf16.mxu0 0
          %524 = vmatpush1.bf16.msra.mxu0 %v496
          %525 = vmatprep.subr.bf16.mxu0 0
          %526 = vmatpush1.bf16.msra.mxu0 %v495
          %527 = vmatprep.subr.bf16.mxu0 0
          %528 = vmatpush2.bf16.msra.mxu0 0
          %529 = vmatprep.subr.bf16.mxu0 0
          %530 = vmatpush2.bf16.msra.mxu0 0
          %531 = vmatprep.subr.bf16.mxu0 0
          %532 = vmatpush2.bf16.msra.mxu0 0
          %533 = vmatprep.subr.bf16.mxu0 0
          %534 = vmatpush2.bf16.msra.mxu0 0
          %535 = vmatprep.subr.bf16.mxu0 0
          %536 = vmatpush2.bf16.msra.mxu0 0
          %537 = vmatprep.subr.bf16.mxu0 0
          %538 = vmatpush2.bf16.msra.mxu0 0
          %539 = vmatprep.subr.bf16.mxu0 0
          %540 = vmatpush2.bf16.msra.mxu0 0
          %541 = vmatprep.subr.bf16.mxu0 0
          %542 = vmatpush2.bf16.msra.mxu0 0
          %543 = vmatprep.mubr.bf16.mxu0 0
          %544 = vmatmul.mubr.bf16.gmra.mxu0 %v461
          %v545 = vpop.f32.mrf.mxu0
          %v546 = vadd.f32 %v455, %v545
          %v547 = vpop.f32.mrf.mxu0
          %v548 = vpop.f32.mrf.mxu0
          %v549 = vadd.f32 %v455, %v548
          %v550 = vpop.f32.mrf.mxu0
          %551 = vdwg.mxu0
          %v552 = vmul.f32 %v546, 0.5
          %v553 = vmul.f32 %v549, 0.5
          %v554 = vmul.f32 %v546, 0.70710677
          %v555 = vmul.f32 %v549, 0.70710677
          %v556 = verf.f32.pop %v554
          %v557 = verf.f32.pop %v555
          %v558 = vadd.f32 %v556, 1.0
          %v559 = vadd.f32 %v557, 1.0
          %v560 = vmul.f32 %v552, %v558
          %v561 = vmul.f32 %v553, %v559
          %562 = vadd.xlane.f32.xlu0 %v560
          %v563 = vpop.xlane.xlu0 %562
          %564 = vadd.xlane.f32.xlu0 %v561
          %v565 = vpop.xlane.xlu0 %564
          %v566 = vrcp.pop 128.0
          %v567 = vmul.f32 %v563, %v566
          %v568 = vmul.f32 %v565, %v566
          %v569 = vsub.f32 %v560, %v567
          %v570 = vsub.f32 %v561, %v568
          %v571 = vmul.f32 %v569, %v569
          %v572 = vmul.f32 %v570, %v570
          %573 = vadd.xlane.f32.xlu0 %v571
          %v574 = vpop.xlane.xlu0 %573
          %575 = vadd.xlane.f32.xlu0 %v572
          %v576 = vpop.xlane.xlu0 %575
          %v577 = vmul.f32 %v574, %v566
          %v578 = vmul.f32 %v576, %v566
          %v579 = vadd.f32 %v577, 1e-12
          %v580 = vadd.f32 %v578, 1e-12
          %v581 = vrsqrt.pop %v579
          %v582 = vrsqrt.pop %v580
          %v583 = vmul.f32 %v569, %v581
          %v584 = vmul.f32 %v570, %v582
          %v585 = vld [vmem:[%s3] sm:$0x1]
          %v587 = vlaneseq
          %v588 = vshrl.u32 %v587, 7
          %v589 = vsub.s32 0, %v588
          %v590 = vrot.slane %v585, %v589
          %v592 = vmul.f32 %v583, %v590
          %v593 = vmul.f32 %v584, %v590
          %v594 = vld [vmem:[%s4] sm:$0x1]
          %v596 = vlaneseq
          %v597 = vshrl.u32 %v596, 7
          %v598 = vsub.s32 0, %v597
          %v599 = vrot.slane %v594, %v598
          %v601 = vadd.f32 %v592, %v599
          %v602 = vadd.f32 %v593, %v599
          %v603 = vpack.c.bf16 %v602, %v601
          %v605 = vunpack.c.l.b16 %v603
          %v606 = vunpack.c.h.b16 %v603
          %v607 = vpack.c.b16 %v605, %v605
          %v608 = vpack.c.b16 %v606, %v606
          %611 = vst [vmem:[#allocation2] sm:$0xf] %v607
          %612 = vst [vmem:[#allocation2 + $0x4] sm:$0xf] %v608
        $region90: #{bert_lm_prediction_head.1} parent=81 // pred_fallthru
          _
        %v613 = vld [vmem:[#allocation2] sm:$0xf]
        %v614 = vld [vmem:[#allocation2 + $0x4] sm:$0xf]
        %v615 = vld [vmem:[%s376] sm:$0xff]
        %v616 = vld [vmem:[%s376 + $0x8] sm:$0xff]
        %v617 = vld [vmem:[%s376 + $0x10] sm:$0xff]
        %v618 = vld [vmem:[%s376 + $0x18] sm:$0xff]
        %v619 = vld [vmem:[%s376 + $0x20] sm:$0xff]
        %v620 = vld [vmem:[%s376 + $0x28] sm:$0xff]
        %v621 = vld [vmem:[%s376 + $0x30] sm:$0xff]
        %v622 = vld [vmem:[%s376 + $0x38] sm:$0xff]
        %v623 = vld [vmem:[%s376 + $0x40] sm:$0xff]
        %v624 = vld [vmem:[%s376 + $0x48] sm:$0xff]
        %v625 = vld [vmem:[%s376 + $0x50] sm:$0xff]
        %v626 = vld [vmem:[%s376 + $0x58] sm:$0xff]
        %v627 = vld [vmem:[%s376 + $0x60] sm:$0xff]
        %v628 = vld [vmem:[%s376 + $0x68] sm:$0xff]
        %v629 = vld [vmem:[%s376 + $0x70] sm:$0xff]
        %v630 = vld [vmem:[%s376 + $0x78] sm:$0xff]
        %v631 = vld [vmem:[%s423] sm:$0x3]
        %v633 = vlaneseq
        %v634 = vshrl.u32 %v633, 7
        %v635 = vsub.s32 0, %v634
        %v636 = vrot.slane %v631, %v635
        %v637 = vlaneseq
        %v638 = vshrl.u32 %v637, 7
        %v639 = vsub.s32 1, %v638
        %v640 = vrot.slane %v631, %v639
        %v645 = vunpack.c.l.b16 %v613
        %v646 = vunpack.c.l.b16 %v614
        %v647 = vpack.c.b16 %v646, %v645
        %v665 = vunpack.c.l.b16 %v615
        %v666 = vunpack.c.h.b16 %v615
        %v667 = vunpack.c.l.b16 %v616
        %v668 = vunpack.c.h.b16 %v616
        %v669 = vunpack.c.l.b16 %v617
        %v670 = vunpack.c.h.b16 %v617
        %v671 = vunpack.c.l.b16 %v618
        %v672 = vunpack.c.h.b16 %v618
        %v673 = vunpack.c.l.b16 %v619
        %v674 = vunpack.c.h.b16 %v619
        %v675 = vunpack.c.l.b16 %v620
        %v676 = vunpack.c.h.b16 %v620
        %v677 = vunpack.c.l.b16 %v621
        %v678 = vunpack.c.h.b16 %v621
        %v679 = vunpack.c.l.b16 %v622
        %v680 = vunpack.c.h.b16 %v622
        %v681 = vunpack.c.l.b16 %v623
        %v682 = vunpack.c.h.b16 %v623
        %v683 = vunpack.c.l.b16 %v624
        %v684 = vunpack.c.h.b16 %v624
        %v685 = vunpack.c.l.b16 %v625
        %v686 = vunpack.c.h.b16 %v625
        %v687 = vunpack.c.l.b16 %v626
        %v688 = vunpack.c.h.b16 %v626
        %v689 = vunpack.c.l.b16 %v627
        %v690 = vunpack.c.h.b16 %v627
        %v691 = vunpack.c.l.b16 %v628
        %v692 = vunpack.c.h.b16 %v628
        %v693 = vunpack.c.l.b16 %v629
        %v694 = vunpack.c.h.b16 %v629
        %v695 = vunpack.c.l.b16 %v630
        %v696 = vunpack.c.h.b16 %v630
        %v697 = vpack.c.b16 %v667, %v665
        %v698 = vpack.c.b16 %v668, %v666
        %v699 = vpack.c.b16 %v671, %v669
        %v700 = vpack.c.b16 %v672, %v670
        %v701 = vpack.c.b16 %v675, %v673
        %v702 = vpack.c.b16 %v676, %v674
        %v703 = vpack.c.b16 %v679, %v677
        %v704 = vpack.c.b16 %v680, %v678
        %v705 = vpack.c.b16 %v683, %v681
        %v706 = vpack.c.b16 %v684, %v682
        %v707 = vpack.c.b16 %v687, %v685
        %v708 = vpack.c.b16 %v688, %v686
        %v709 = vpack.c.b16 %v691, %v689
        %v710 = vpack.c.b16 %v692, %v690
        %v711 = vpack.c.b16 %v695, %v693
        %v712 = vpack.c.b16 %v696, %v694
        %729 = vmatprep.subr.bf16.mxu0 %v712
        %730 = vmatpush1.bf16.msra.mxu0 %v711
        %731 = vmatprep.subr.bf16.mxu0 %v710
        %732 = vmatpush1.bf16.msra.mxu0 %v709
        %733 = vmatprep.subr.bf16.mxu0 %v708
        %734 = vmatpush1.bf16.msra.mxu0 %v707
        %735 = vmatprep.subr.bf16.mxu0 %v706
        %736 = vmatpush1.bf16.msra.mxu0 %v705
        %737 = vmatprep.subr.bf16.mxu0 %v704
        %738 = vmatpush1.bf16.msra.mxu0 %v703
        %739 = vmatprep.subr.bf16.mxu0 %v702
        %740 = vmatpush1.bf16.msra.mxu0 %v701
        %741 = vmatprep.subr.bf16.mxu0 %v700
        %742 = vmatpush1.bf16.msra.mxu0 %v699
        %743 = vmatprep.subr.bf16.mxu0 %v698
        %744 = vmatpush1.bf16.msra.mxu0 %v697
        %745 = vmatprep.subr.bf16.mxu0 0
        %746 = vmatpush2.bf16.msra.mxu0 0
        %747 = vmatprep.subr.bf16.mxu0 0
        %748 = vmatpush2.bf16.msra.mxu0 0
        %749 = vmatprep.subr.bf16.mxu0 0
        %750 = vmatpush2.bf16.msra.mxu0 0
        %751 = vmatprep.subr.bf16.mxu0 0
        %752 = vmatpush2.bf16.msra.mxu0 0
        %753 = vmatprep.subr.bf16.mxu0 0
        %754 = vmatpush2.bf16.msra.mxu0 0
        %755 = vmatprep.subr.bf16.mxu0 0
        %756 = vmatpush2.bf16.msra.mxu0 0
        %757 = vmatprep.subr.bf16.mxu0 0
        %758 = vmatpush2.bf16.msra.mxu0 0
        %759 = vmatprep.subr.bf16.mxu0 0
        %760 = vmatpush2.bf16.msra.mxu0 0
        %761 = vmatprep.mubr.bf16.mxu0 0
        %762 = vmatmul.mubr.bf16.gmra.mxu0 %v647
        %v763 = vpop.f32.mrf.mxu0
        %v764 = vadd.f32 %v636, %v763
        %v765 = vpop.f32.mrf.mxu0
        %v766 = vadd.f32 %v640, %v765
        %v767 = vpop.f32.mrf.mxu0
        %v768 = vadd.f32 %v636, %v767
        %v769 = vpop.f32.mrf.mxu0
        %v770 = vadd.f32 %v640, %v769
        %771 = vdwg.mxu0
        %772 = vst [vmem:[%s412] sm:$0xff] %v764
        %773 = vst [vmem:[%s412 + $0x8] sm:$0xff] %v766
        %774 = vst [vmem:[%s412 + $0x10] sm:$0xff] %v768
        %775 = vst [vmem:[%s412 + $0x18] sm:$0xff] %v770
        %s776 = sand.u32 %s202, 1
        %s777 = sand.u32 %s202, 1
        %s778 = smul.addr %s777, 32
        %s779 = scalar_lea.vmem [#allocation4], %s778
        // Predicated region
        $region91: #{bert_lm_prediction_head.1} parent=81 // pred_check
          %p780 = pneg %p212
        $region92: #{bert_lm_prediction_head.1} parent=81 // pred_check_branch
          %782 = sbr.rel (%p780) target = $region94
        $region93: #{bert_lm_prediction_head.1} parent=81 // pred_region
          %s783 = smul.u32 2, %s22
          %s784 = smul.u32 2, %s23
          %s785 = smul.addr %s783, 8
          %s786 = sadd.s32 %s784, %s785
          %s787 = smul.addr %s786, 8
          %s788 = scalar_lea.vmem %s7, %s787
          // Predicated region
          $region95: #{bert_lm_prediction_head.1} parent=93 // pred_check
            _
          $region96: #{bert_lm_prediction_head.1} parent=93 // pred_check_branch
            %790 = sbr.rel (0) target = $region98
          $region97: #{bert_lm_prediction_head.1} parent=93 // pred_region
            // Predicated region
            $region99: #{bert_lm_prediction_head.1} parent=97 // pred_check
              _
            $region100: #{bert_lm_prediction_head.1} parent=97 // pred_check_branch
              %792 = sbr.rel (0) target = $region102
            $region101: #{bert_lm_prediction_head.1} parent=97 // pred_region
              loop: start=0, step=1, limit=1
              $region103: #{bert_lm_prediction_head.1} parent=101 // loop_pre_header
                _
              $region104: #{bert_lm_prediction_head.1} parent=101 // loop_header
                %s794 = sphi 0, %s798
                %p795 = scmp.ge.s32.totalorder %s794, 1
                %s799 = sphi %s779, %s779
                %s800 = sphi %s788, %s788
              $region105: #{bert_lm_prediction_head.1} parent=101 // loop_header_branch
                %797 = sbr.rel (%p795) target = $region109
              $region106: #{bert_lm_prediction_head.1} parent=101 // loop_body
                %v801 = vld [vmem:[%s799] sm:$0xff]
                %802 = vst [vmem:[%s800] sm:$0xff] %v801
                %v803 = vld [vmem:[%s799 + $0x8] sm:$0xff]
                %804 = vst [vmem:[%s800 + $0x8] sm:$0xff] %v803
                %v805 = vld [vmem:[%s799 + $0x10] sm:$0xff]
                %806 = vst [vmem:[%s800 + $0x40] sm:$0xff] %v805
                %v807 = vld [vmem:[%s799 + $0x18] sm:$0xff]
                %808 = vst [vmem:[%s800 + $0x48] sm:$0xff] %v807
              $region107: #{bert_lm_prediction_head.1} parent=101 // loop_footer
                %s798 = sadd.s32 1, %s794
              $region108: #{bert_lm_prediction_head.1} parent=101 // loop_footer_branch
                %793 = sbr.rel target = $region104
              $region109: #{bert_lm_prediction_head.1} parent=101 // loop_exit
                _
            $region102: #{bert_lm_prediction_head.1} parent=97 // pred_fallthru
              _
            // Predicated region
            $region110: #{bert_lm_prediction_head.1} parent=97 // pred_check
              _
            $region111: #{bert_lm_prediction_head.1} parent=97 // pred_check_branch
              %810 = sbr.rel target = $region113
            $region112: #{bert_lm_prediction_head.1} parent=97 // pred_region
              _
            $region113: #{bert_lm_prediction_head.1} parent=97 // pred_fallthru
              _
          $region98: #{bert_lm_prediction_head.1} parent=93 // pred_fallthru
            _
          %811 = vnop
        $region94: #{bert_lm_prediction_head.1} parent=81 // pred_fallthru
          _
      $region82: #{bert_lm_prediction_head.1} parent=5 // pred_fallthru
        _
      %p812 = scmp.le.s32.totalorder 2, %s13
      // Predicated region
      $region114: #{bert_lm_prediction_head.1} parent=5 // pred_check
        %p813 = pneg %p812
      $region115: #{bert_lm_prediction_head.1} parent=5 // pred_check_branch
        %815 = sbr.rel (%p813) target = $region117
      $region116: #{bert_lm_prediction_head.1} parent=5 // pred_region
        %s816 = ssub.s32 %s13, 2
        // Predicated region
        $region118: #{bert_lm_prediction_head.1} parent=116 // pred_check
          %p817 = pneg %p218
        $region119: #{bert_lm_prediction_head.1} parent=116 // pred_check_branch
          %819 = sbr.rel (%p817) target = $region121
        $region120: #{bert_lm_prediction_head.1} parent=116 // pred_region
          %s820 = sand.u32 %s203, 1
          %s821 = sand.u32 %s203, 1
          %s822 = smul.addr %s821, 32
          %s823 = scalar_lea.vmem [#allocation4], %s822
        $region121: #{bert_lm_prediction_head.1} parent=116 // pred_fallthru
          _
      $region117: #{bert_lm_prediction_head.1} parent=5 // pred_fallthru
        _
    $region6: #{bert_lm_prediction_head.1} parent=1 // loop_footer
      %s17 = sadd.s32 1, %s13
    $region7: #{bert_lm_prediction_head.1} parent=1 // loop_footer_branch
      %12 = sbr.rel target = $region3
    $region8: #{bert_lm_prediction_head.1} parent=1 // loop_exit
      _

</llo_original>
